<compile_context>
chip_gen: v7x
topology: tpu7x:2x2x1
jax: 0.10.0
libtpu: 0.0.40
codegen_flags: <defaults>
</compile_context>

<pallas_src>
import functools

import jax
import jax.numpy as jnp
from jax.experimental import pallas as pl
from jax.experimental.pallas import tpu as pltpu

HIST_LEN = 10
LANES = 128
SUBLANES = 8
ALIGN = SUBLANES * LANES   # kernel prefix alignment (1024 elements)
TM_MAX = 4096              # rows/step: 2 inputs x 2 bufs x 2 MiB = 8 MiB VMEM (f32)
ACC_ROWS = 64              # fixed accumulator height = 8 f32 vregs per accumulator
NUM_CORES = 2              # leading "parallel" axis (v7x: 2 TCs; no-op on v5e/v6e)
VMEM_LIMIT = 32 * 1024 * 1024


def _wmse_kernel(pred_ref, gt_ref, sw_ref, swd_ref, *,
                 boundaries, w0, rows_valid, tile_rows, acc_rows):
    c = pl.program_id(0)
    i = pl.program_id(1)
    steps = pl.num_programs(1)

    # per-core accumulators live in the (revisited) output blocks; zero at i==0.
    @pl.when(i == 0)
    def _():
        sw_ref[...] = jnp.zeros_like(sw_ref)
        swd_ref[...] = jnp.zeros_like(swd_ref)

    # in-kernel upcast: inputs are streamed at native dtype (e.g. bf16 = 2 B/elem).
    gt = gt_ref[...].astype(jnp.float32)
    pred = pred_ref[...].astype(jnp.float32)

    # nearest-bin weight lookup as a pruned compare/select cascade against
    # compile-time midpoint constants (uniform bins). Exact midpoints keep the
    # LOWER bin, matching argmin's first-min tie-break (up to f32 rounding).
    # Boundaries between bins with equal (epsilon-clamped) weights were dropped
    # at init time, so this is <= 9 cmp+sel per element and usually fewer.
    w = jnp.full(gt.shape, jnp.float32(w0), dtype=jnp.float32)
    for mid, val in boundaries:
        w = jnp.where(gt > jnp.float32(mid), jnp.float32(val), w)

    diff = gt - pred
    wd = w * (diff * diff)

    # global block index of this step; the input index_map clamps the DMA for
    # past-the-end blocks, masking below guarantees correctness for them.
    gb = c * steps + i
    block_may_be_ragged = (gb + 1) * tile_rows > rows_valid

    def _accum(w_acc, wd_acc):
        # vreg-wise VPU adds into the fixed (acc_rows, 128) accumulators.
        sw_ref[...] += jnp.sum(w_acc.reshape(-1, acc_rows, LANES), axis=0)[None]
        swd_ref[...] += jnp.sum(wd_acc.reshape(-1, acc_rows, LANES), axis=0)[None]

    @pl.when(jnp.logical_not(block_may_be_ragged))
    def _():
        _accum(w, wd)                 # interior blocks: fully valid, unmasked

    @pl.when(block_may_be_ragged)
    def _():
        # prefix is 1024-aligned, so validity is purely row-based; an int32 row
        # index is safe for inputs up to 2**38 elements.
        row = jax.lax.broadcasted_iota(jnp.int32, gt.shape, 0) + gb * tile_rows
        valid = row < rows_valid
        _accum(jnp.where(valid, w, 0.0), jnp.where(valid, wd, 0.0))


class WeightedMSEPallas:
    """JAX/Pallas port of WeightedMSE (weights built from `targets` at init)."""

    def __init__(self, targets, weight_alpha=1.0, weight_epsilon=0.1,
                 mse_weight=1.0, hist_len=HIST_LEN):
        self.mse_weight = float(mse_weight)
        self.hist_len = int(hist_len)

        # --- hist_frequency_estimation ---
        y = jnp.ravel(targets).astype(jnp.float32)
        ranges = jnp.linspace(0.0, 1.0, hist_len + 1, dtype=jnp.float32)[:-1]
        idxs = (hist_len * y).astype(jnp.int32)   # trunc toward zero == .to(torch.int)
        # NOTE: targets exactly equal to 1.0 map to bin `hist_len`, which
        # jnp.bincount(length=hist_len) drops (torch.bincount would append an
        # extra bin that only enters via freq_min/freq_max).
        freqs = jnp.bincount(idxs, length=hist_len)

        # --- get_dens_target's sequential replacement cascade, per bin index ---
        mapped = jnp.arange(hist_len, dtype=freqs.dtype)
        for idx in range(hist_len):
            mapped = jnp.where(mapped == idx, freqs[idx], mapped)

        fmin = jnp.min(freqs).astype(jnp.float32)
        fmax = jnp.max(freqs).astype(jnp.float32)
        # NOTE: fmax == fmin divides by zero (NaN weights); inherited from the
        # reference module on purpose.
        dens = (mapped.astype(jnp.float32) - fmin) / (fmax - fmin)

        # --- get_weight_target's un-normalized per-bin weight table ---
        wtab = jnp.maximum(1.0 - float(weight_alpha) * dens,
                           jnp.float32(weight_epsilon))

        # bake everything into compile-time Python constants (no SMEM operands).
        ranges_f = [float(v) for v in ranges]
        wtab_f = [float(v) for v in wtab]
        midpoints = [(ranges_f[j] + ranges_f[j + 1]) * 0.5
                     for j in range(hist_len - 1)]

        # prune boundaries where the weight does not change (epsilon-clamped
        # bins collapse); each kept boundary costs 2 VALU ops/element in-kernel.
        self.w0 = wtab_f[0]
        self.boundaries = tuple(
            (midpoints[j - 1], wtab_f[j])
            for j in range(1, hist_len) if wtab_f[j] != wtab_f[j - 1])

    def _weights(self, gt_f32):
        """Plain-JAX weight lookup (used only for the tiny ragged tail)."""
        w = jnp.full_like(gt_f32, jnp.float32(self.w0))
        for mid, val in self.boundaries:
            w = jnp.where(gt_f32 > jnp.float32(mid), jnp.float32(val), w)
        return w

    def __call__(self, y_pred, y_gt):
        if y_pred.shape != y_gt.shape:
            # TODO(synk): express batch/channel broadcast via the gt/pred
            # BlockSpec index_map instead of materializing the expanded operand.
            y_pred, y_gt = jnp.broadcast_arrays(y_pred, y_gt)
        pred = jnp.ravel(y_pred)          # keep native dtype; upcast in-kernel
        gt = jnp.ravel(y_gt)
        n = int(pred.size)
        if n == 0:                         # torch.mean over empty -> NaN
            return jnp.float32(jnp.nan)
        assert n < 2 ** 38, "row-index mask uses int32 row indices"

        n_main = n - (n % ALIGN)           # 1024-aligned prefix goes to the kernel
        sw = jnp.float32(0.0)
        swd = jnp.float32(0.0)

        if n_main:
            rows = n_main // LANES         # multiple of 8
            tm = min(TM_MAX, rows)
            acc_rows = ACC_ROWS if tm % ACC_ROWS == 0 else SUBLANES
            nblocks = pl.cdiv(rows, tm)
            steps = pl.cdiv(nblocks, NUM_CORES)

            if n_main == n:
                pred_m = pred.reshape(rows, LANES)
                gt_m = gt.reshape(rows, LANES)
            else:
                pred_m = pred[:n_main].reshape(rows, LANES)
                gt_m = gt[:n_main].reshape(rows, LANES)

            def in_map(c, i):
                # clamp past-the-end blocks to the last real block; the kernel
                # masks them out by global row index.
                return (jnp.minimum(c * steps + i, nblocks - 1), 0)

            kern = functools.partial(
                _wmse_kernel,
                boundaries=self.boundaries, w0=self.w0,
                rows_valid=rows, tile_rows=tm, acc_rows=acc_rows)

            out_w, out_wd = pl.pallas_call(
                kern,
                out_shape=(
                    jax.ShapeDtypeStruct((NUM_CORES, acc_rows, LANES), jnp.float32),
                    jax.ShapeDtypeStruct((NUM_CORES, acc_rows, LANES), jnp.float32)),
                grid=(NUM_CORES, steps),
                in_specs=[
                    pl.BlockSpec((tm, LANES), in_map),   # y_pred tiles
                    pl.BlockSpec((tm, LANES), in_map),   # y_gt tiles
                ],
                out_specs=(
                    pl.BlockSpec((1, acc_rows, LANES), lambda c, i: (c, 0, 0)),
                    pl.BlockSpec((1, acc_rows, LANES), lambda c, i: (c, 0, 0)),
                ),
                compiler_params=pltpu.CompilerParams(
                    dimension_semantics=("parallel", "arbitrary"),
                    vmem_limit_bytes=VMEM_LIMIT),
            )(pred_m, gt_m)
            # tiny wrapper-side reduction over the per-core partial-sum blocks.
            sw = sw + jnp.sum(out_w)
            swd = swd + jnp.sum(out_wd)

        n_tail = n - n_main
        if n_tail:
            # < 1024 ragged elements: handled in plain JAX instead of padding
            # (and re-streaming) the full inputs.
            gt_t = gt[n_main:].astype(jnp.float32)
            pr_t = pred[n_main:].astype(jnp.float32)
            w_t = self._weights(gt_t)
            d_t = gt_t - pr_t
            sw = sw + jnp.sum(w_t)
            swd = swd + jnp.sum(w_t * d_t * d_t)

        # mean(mse_w * (w/mean(w)) * diff^2) == mse_w * sum(w*diff^2) / sum(w)
        return jnp.float32(self.mse_weight) * swd / sw


if __name__ == "__main__":
    key = jax.random.PRNGKey(0)
    k_t, k_gt, k_n = jax.random.split(key, 3)

    # targets used to build the histogram weighting scheme (values in [0, 1))
    targets = jax.random.uniform(k_t, (4096,), dtype=jnp.float32)

    # NCHW-like regression maps
    shape = (2, 4, 16, 16)
    y_gt = jax.random.uniform(k_gt, shape, dtype=jnp.float32)
    y_pred = jnp.clip(y_gt + 0.1 * jax.random.normal(k_n, shape, dtype=jnp.float32),
                      0.0, 1.0)

    criterion = WeightedMSEPallas(targets, weight_alpha=1.0,
                                  weight_epsilon=0.1, mse_weight=1.0)
    loss = criterion(y_pred, y_gt)
    jax.block_until_ready(loss)
    print("KERNEL_OK")
</pallas_src>

<mosaic_0001>
module attributes {stable_mosaic.version = 11 : i64} {
  func.func @_wmse_kernel(%arg0: i32, %arg1: i32, %arg2: memref<16x128xf32, #tpu.memory_space<vmem>>, %arg3: memref<16x128xf32, #tpu.memory_space<vmem>>, %arg4: memref<1x8x128xf32, #tpu.memory_space<vmem>>, %arg5: memref<1x8x128xf32, #tpu.memory_space<vmem>>) attributes {dimension_semantics = [#tpu.dimension_semantics<parallel>, #tpu.dimension_semantics<arbitrary>], iteration_bounds = array<i64: 2, 1>, scalar_prefetch = 0 : i64, scratch_operands = 0 : i64, tpu.core_type = #tpu.core_type<tc>, window_params = [{transform_indices = @transform_0, window_bounds = array<i64: 16, 128>}, {transform_indices = @transform_1, window_bounds = array<i64: 16, 128>}, {transform_indices = @transform_2, window_bounds = array<i64: 1, 8, 128>}, {transform_indices = @transform_3, window_bounds = array<i64: 1, 8, 128>}]} {
    %c0_i32 = arith.constant 0 : i32
    %0 = arith.cmpi eq, %arg1, %c0_i32 : i32
    %1 = arith.extui %0 : i1 to i32
    %c0_i32_0 = arith.constant 0 : i32
    %2 = arith.cmpi ne, %1, %c0_i32_0 : i32
    scf.if %2 {
      %cst_24 = arith.constant 0.000000e+00 : f32
      %51 = vector.broadcast %cst_24 : f32 to vector<1x8x128xf32>
      %c0_25 = arith.constant 0 : index
      %c0_26 = arith.constant 0 : index
      %c0_27 = arith.constant 0 : index
      %52 = vector.load %arg4[%c0_25, %c0_26, %c0_27] : memref<1x8x128xf32, #tpu.memory_space<vmem>>, vector<1x8x128xf32>
      tpu.vector_store %arg4[%c0_25, %c0_26, %c0_27], %51 {strides = array<i32>} : memref<1x8x128xf32, #tpu.memory_space<vmem>>, vector<1x8x128xf32>,
      %cst_28 = arith.constant 0.000000e+00 : f32
      %53 = vector.broadcast %cst_28 : f32 to vector<1x8x128xf32>
      %c0_29 = arith.constant 0 : index
      %c0_30 = arith.constant 0 : index
      %c0_31 = arith.constant 0 : index
      %54 = vector.load %arg5[%c0_29, %c0_30, %c0_31] : memref<1x8x128xf32, #tpu.memory_space<vmem>>, vector<1x8x128xf32>
      tpu.vector_store %arg5[%c0_29, %c0_30, %c0_31], %53 {strides = array<i32>} : memref<1x8x128xf32, #tpu.memory_space<vmem>>, vector<1x8x128xf32>,
    } else {
    }
    %c0 = arith.constant 0 : index
    %c0_1 = arith.constant 0 : index
    %3 = vector.load %arg3[%c0, %c0_1] : memref<16x128xf32, #tpu.memory_space<vmem>>, vector<16x128xf32>
    %c0_2 = arith.constant 0 : index
    %c0_3 = arith.constant 0 : index
    %4 = vector.load %arg2[%c0_2, %c0_3] : memref<16x128xf32, #tpu.memory_space<vmem>>, vector<16x128xf32>
    %cst = arith.constant 0.163636386 : f32
    %5 = vector.broadcast %cst : f32 to vector<16x128xf32>
    %cst_4 = arith.constant 5.000000e-02 : f32
    %6 = vector.broadcast %cst_4 : f32 to vector<16x128xf32>
    %7 = arith.cmpf ogt, %3, %6 : vector<16x128xf32>
    %cst_5 = arith.constant 0.527272701 : f32
    %8 = vector.broadcast %cst_5 : f32 to vector<16x128xf32>
    %9 = arith.select %7, %8, %5 : vector<16x128xi1>, vector<16x128xf32>
    %cst_6 = arith.constant 1.500000e-01 : f32
    %10 = vector.broadcast %cst_6 : f32 to vector<16x128xf32>
    %11 = arith.cmpf ogt, %3, %10 : vector<16x128xf32>
    %cst_7 = arith.constant 0.690909087 : f32
    %12 = vector.broadcast %cst_7 : f32 to vector<16x128xf32>
    %13 = arith.select %11, %12, %9 : vector<16x128xi1>, vector<16x128xf32>
    %cst_8 = arith.constant 0.350000024 : f32
    %14 = vector.broadcast %cst_8 : f32 to vector<16x128xf32>
    %15 = arith.cmpf ogt, %3, %14 : vector<16x128xf32>
    %cst_9 = arith.constant 0.399999976 : f32
    %16 = vector.broadcast %cst_9 : f32 to vector<16x128xf32>
    %17 = arith.select %15, %16, %13 : vector<16x128xi1>, vector<16x128xf32>
    %cst_10 = arith.constant 4.500000e-01 : f32
    %18 = vector.broadcast %cst_10 : f32 to vector<16x128xf32>
    %19 = arith.cmpf ogt, %3, %18 : vector<16x128xf32>
    %cst_11 = arith.constant 1.000000e-01 : f32
    %20 = vector.broadcast %cst_11 : f32 to vector<16x128xf32>
    %21 = arith.select %19, %20, %17 : vector<16x128xi1>, vector<16x128xf32>
    %cst_12 = arith.constant 5.500000e-01 : f32
    %22 = vector.broadcast %cst_12 : f32 to vector<16x128xf32>
    %23 = arith.cmpf ogt, %3, %22 : vector<16x128xf32>
    %cst_13 = arith.constant 1.000000e+00 : f32
    %24 = vector.broadcast %cst_13 : f32 to vector<16x128xf32>
    %25 = arith.select %23, %24, %21 : vector<16x128xi1>, vector<16x128xf32>
    %cst_14 = arith.constant 6.500000e-01 : f32
    %26 = vector.broadcast %cst_14 : f32 to vector<16x128xf32>
    %27 = arith.cmpf ogt, %3, %26 : vector<16x128xf32>
    %cst_15 = arith.constant 0.818181812 : f32
    %28 = vector.broadcast %cst_15 : f32 to vector<16x128xf32>
    %29 = arith.select %27, %28, %25 : vector<16x128xi1>, vector<16x128xf32>
    %cst_16 = arith.constant 7.500000e-01 : f32
    %30 = vector.broadcast %cst_16 : f32 to vector<16x128xf32>
    %31 = arith.cmpf ogt, %3, %30 : vector<16x128xf32>
    %cst_17 = arith.constant 0.5090909 : f32
    %32 = vector.broadcast %cst_17 : f32 to vector<16x128xf32>
    %33 = arith.select %31, %32, %29 : vector<16x128xi1>, vector<16x128xf32>
    %cst_18 = arith.constant 8.500000e-01 : f32
    %34 = vector.broadcast %cst_18 : f32 to vector<16x128xf32>
    %35 = arith.cmpf ogt, %3, %34 : vector<16x128xf32>
    %cst_19 = arith.constant 0.181818187 : f32
    %36 = vector.broadcast %cst_19 : f32 to vector<16x128xf32>
    %37 = arith.select %35, %36, %33 : vector<16x128xi1>, vector<16x128xf32>
    %38 = arith.subf %3, %4 : vector<16x128xf32>
    %39 = arith.mulf %38, %38 : vector<16x128xf32>
    %40 = arith.mulf %37, %39 : vector<16x128xf32>
    %c1_i32 = arith.constant 1 : i32
    %41 = arith.muli %arg0, %c1_i32 : i32
    %42 = arith.addi %41, %arg1 : i32
    %c1_i32_20 = arith.constant 1 : i32
    %43 = arith.addi %42, %c1_i32_20 : i32
    %c16_i32 = arith.constant 16 : i32
    %44 = arith.muli %43, %c16_i32 : i32
    %c16_i32_21 = arith.constant 16 : i32
    %45 = arith.cmpi sgt, %44, %c16_i32_21 : i32
    %true = arith.constant true
    %46 = arith.xori %45, %true : i1
    %47 = arith.extui %46 : i1 to i32
    %c0_i32_22 = arith.constant 0 : i32
    %48 = arith.cmpi ne, %47, %c0_i32_22 : i32
    scf.if %48 {
      %c0_24 = arith.constant 0 : index
      %c0_25 = arith.constant 0 : index
      %c0_26 = arith.constant 0 : index
      %51 = vector.load %arg4[%c0_24, %c0_25, %c0_26] : memref<1x8x128xf32, #tpu.memory_space<vmem>>, vector<1x8x128xf32>
      %52 = vector.shape_cast %37 : vector<16x128xf32> to vector<2x8x128xf32>
      %cst_27 = arith.constant dense<0.000000e+00> : vector<8x128xf32>
      %53 = vector.multi_reduction <add>, %52, %cst_27 [0] : vector<2x8x128xf32> to vector<8x128xf32>
      %54 = vector.shape_cast %53 : vector<8x128xf32> to vector<1x8x128xf32>
      %55 = arith.addf %51, %54 : vector<1x8x128xf32>
      %c0_28 = arith.constant 0 : index
      %c0_29 = arith.constant 0 : index
      %c0_30 = arith.constant 0 : index
      %56 = vector.load %arg4[%c0_28, %c0_29, %c0_30] : memref<1x8x128xf32, #tpu.memory_space<vmem>>, vector<1x8x128xf32>
      tpu.vector_store %arg4[%c0_28, %c0_29, %c0_30], %55 {strides = array<i32>} : memref<1x8x128xf32, #tpu.memory_space<vmem>>, vector<1x8x128xf32>,
      %c0_31 = arith.constant 0 : index
      %c0_32 = arith.constant 0 : index
      %c0_33 = arith.constant 0 : index
      %57 = vector.load %arg5[%c0_31, %c0_32, %c0_33] : memref<1x8x128xf32, #tpu.memory_space<vmem>>, vector<1x8x128xf32>
      %58 = vector.shape_cast %40 : vector<16x128xf32> to vector<2x8x128xf32>
      %cst_34 = arith.constant dense<0.000000e+00> : vector<8x128xf32>
      %59 = vector.multi_reduction <add>, %58, %cst_34 [0] : vector<2x8x128xf32> to vector<8x128xf32>
      %60 = vector.shape_cast %59 : vector<8x128xf32> to vector<1x8x128xf32>
      %61 = arith.addf %57, %60 : vector<1x8x128xf32>
      %c0_35 = arith.constant 0 : index
      %c0_36 = arith.constant 0 : index
      %c0_37 = arith.constant 0 : index
      %62 = vector.load %arg5[%c0_35, %c0_36, %c0_37] : memref<1x8x128xf32, #tpu.memory_space<vmem>>, vector<1x8x128xf32>
      tpu.vector_store %arg5[%c0_35, %c0_36, %c0_37], %61 {strides = array<i32>} : memref<1x8x128xf32, #tpu.memory_space<vmem>>, vector<1x8x128xf32>,
    } else {
    }
    %49 = arith.extui %45 : i1 to i32
    %c0_i32_23 = arith.constant 0 : i32
    %50 = arith.cmpi ne, %49, %c0_i32_23 : i32
    scf.if %50 {
      %51 = tpu.iota {dimensions = array<i32: 0>} : vector<16x128xi32>
      %c16_i32_24 = arith.constant 16 : i32
      %52 = arith.muli %42, %c16_i32_24 : i32
      %53 = vector.broadcast %52 : i32 to vector<16x128xi32>
      %54 = arith.addi %51, %53 : vector<16x128xi32>
      %c16_i32_25 = arith.constant 16 : i32
      %55 = vector.broadcast %c16_i32_25 : i32 to vector<16x128xi32>
      %56 = arith.cmpi slt, %54, %55 : vector<16x128xi32>
      %cst_26 = arith.constant 0.000000e+00 : f32
      %57 = vector.broadcast %cst_26 : f32 to vector<16x128xf32>
      %58 = arith.select %56, %37, %57 : vector<16x128xi1>, vector<16x128xf32>
      %cst_27 = arith.constant 0.000000e+00 : f32
      %59 = vector.broadcast %cst_27 : f32 to vector<16x128xf32>
      %60 = arith.select %56, %40, %59 : vector<16x128xi1>, vector<16x128xf32>
      %c0_28 = arith.constant 0 : index
      %c0_29 = arith.constant 0 : index
      %c0_30 = arith.constant 0 : index
      %61 = vector.load %arg4[%c0_28, %c0_29, %c0_30] : memref<1x8x128xf32, #tpu.memory_space<vmem>>, vector<1x8x128xf32>
      %62 = vector.shape_cast %58 : vector<16x128xf32> to vector<2x8x128xf32>
      %cst_31 = arith.constant dense<0.000000e+00> : vector<8x128xf32>
      %63 = vector.multi_reduction <add>, %62, %cst_31 [0] : vector<2x8x128xf32> to vector<8x128xf32>
      %64 = vector.shape_cast %63 : vector<8x128xf32> to vector<1x8x128xf32>
      %65 = arith.addf %61, %64 : vector<1x8x128xf32>
      %c0_32 = arith.constant 0 : index
      %c0_33 = arith.constant 0 : index
      %c0_34 = arith.constant 0 : index
      %66 = vector.load %arg4[%c0_32, %c0_33, %c0_34] : memref<1x8x128xf32, #tpu.memory_space<vmem>>, vector<1x8x128xf32>
      tpu.vector_store %arg4[%c0_32, %c0_33, %c0_34], %65 {strides = array<i32>} : memref<1x8x128xf32, #tpu.memory_space<vmem>>, vector<1x8x128xf32>,
      %c0_35 = arith.constant 0 : index
      %c0_36 = arith.constant 0 : index
      %c0_37 = arith.constant 0 : index
      %67 = vector.load %arg5[%c0_35, %c0_36, %c0_37] : memref<1x8x128xf32, #tpu.memory_space<vmem>>, vector<1x8x128xf32>
      %68 = vector.shape_cast %60 : vector<16x128xf32> to vector<2x8x128xf32>
      %cst_38 = arith.constant dense<0.000000e+00> : vector<8x128xf32>
      %69 = vector.multi_reduction <add>, %68, %cst_38 [0] : vector<2x8x128xf32> to vector<8x128xf32>
      %70 = vector.shape_cast %69 : vector<8x128xf32> to vector<1x8x128xf32>
      %71 = arith.addf %67, %70 : vector<1x8x128xf32>
      %c0_39 = arith.constant 0 : index
      %c0_40 = arith.constant 0 : index
      %c0_41 = arith.constant 0 : index
      %72 = vector.load %arg5[%c0_39, %c0_40, %c0_41] : memref<1x8x128xf32, #tpu.memory_space<vmem>>, vector<1x8x128xf32>
      tpu.vector_store %arg5[%c0_39, %c0_40, %c0_41], %71 {strides = array<i32>} : memref<1x8x128xf32, #tpu.memory_space<vmem>>, vector<1x8x128xf32>,
    } else {
    }
    return
  }
  func.func @transform_0(%arg0: i32, %arg1: i32) -> (i32, i32) {
    %c1_i32 = arith.constant 1 : i32
    %0 = arith.muli %arg0, %c1_i32 : i32
    %1 = arith.addi %0, %arg1 : i32
    %c0_i32 = arith.constant 0 : i32
    %2 = arith.minsi %1, %c0_i32 : i32
    %c0_i32_0 = arith.constant 0 : i32
    %c0_i32_1 = arith.constant 0 : i32
    return %2, %c0_i32_0 : i32, i32
  }
  func.func @transform_1(%arg0: i32, %arg1: i32) -> (i32, i32) {
    %c1_i32 = arith.constant 1 : i32
    %0 = arith.muli %arg0, %c1_i32 : i32
    %1 = arith.addi %0, %arg1 : i32
    %c0_i32 = arith.constant 0 : i32
    %2 = arith.minsi %1, %c0_i32 : i32
    %c0_i32_0 = arith.constant 0 : i32
    %c0_i32_1 = arith.constant 0 : i32
    return %2, %c0_i32_0 : i32, i32
  }
  func.func @transform_2(%arg0: i32, %arg1: i32) -> (i32, i32, i32) {
    %c0_i32 = arith.constant 0 : i32
    %c0_i32_0 = arith.constant 0 : i32
    %c0_i32_1 = arith.constant 0 : i32
    return %arg0, %c0_i32, %c0_i32_0 : i32, i32, i32
  }
  func.func @transform_3(%arg0: i32, %arg1: i32) -> (i32, i32, i32) {
    %c0_i32 = arith.constant 0 : i32
    %c0_i32_0 = arith.constant 0 : i32
    %c0_i32_1 = arith.constant 0 : i32
    return %arg0, %c0_i32, %c0_i32_0 : i32, i32, i32
  }
}

</mosaic_0001>

<llo_original>
// kernel: tpu_custom_call.1
$region0: #{tpu_custom_call.1}
  #allocation0 [shape = 'u32[]', space=smem, size = 0x4, offset = 0x4, fixed_abs, tag = 'smem constant byte address 0x4 - core index']
  #allocation1 [shape = 'u32[144,128]{1,0:T(1,128)}', space=vmem, size = 0x12000, scoped, tag = 'internal scratch']
  %s0 = inlined_call_operand.hbm [shape: f32[16,128], index: 0, kind: input, shape index: {}]
  %s1 = inlined_call_operand.hbm [shape: f32[16,128], index: 1, kind: input, shape index: {}]
  %s2 = inlined_call_operand.hbm [shape: f32[2,8,128], index: 2, kind: output, shape index: {0}]
  %s3 = inlined_call_operand.hbm [shape: f32[2,8,128], index: 3, kind: output, shape index: {1}]
  %4 = xla_tuple %s2, %s3
  %s5 = sld [smem:[#allocation0]]
  $region69: #{tpu_custom_call.1} parent=0
    _
  %s7 = ssub.s32 1, %s5
  %s8 = scalar_select 0, %s7, %s5
  $region1: #{tpu_custom_call.1} parent=0
    #allocation2 [shape = 'u8[16384]{0}', space=vmem, size = 0x4000, scoped, tag = 'input window, operand 0']
    #allocation3 [shape = 's32[2]{0}', space=sflag, size = 0x8, scoped, tag = 'scoped memory for tpu_custom_call.1']
    #allocation4 [shape = 's32[2]{0}', space=sflag, size = 0x8, scoped, tag = 'scoped memory for tpu_custom_call.1']
    #allocation5 [shape = 'u8[16384]{0}', space=vmem, size = 0x4000, scoped, tag = 'input window, operand 1']
    #allocation6 [shape = 's32[2]{0}', space=sflag, size = 0x8, scoped, tag = 'scoped memory for tpu_custom_call.1']
    #allocation7 [shape = 'u8[8192]{0}', space=vmem, size = 0x2000, scoped, tag = 'output window, operand 0']
    #allocation8 [shape = 'u8[8192]{0}', space=vmem, size = 0x2000, scoped, tag = 'output window, operand 1']
    #allocation9 [shape = 's32[2]{0}', space=sflag, size = 0x8, scoped, tag = 'scoped memory for tpu_custom_call.1']
    %9 = vsyncpa [#allocation3], 0
    %s10 = scalar_lea.sflag [#allocation3], 1
    %11 = vsyncpa %s10, 0
    %12 = vsyncpa [#allocation6], 0
    %s13 = scalar_lea.sflag [#allocation6], 1
    %14 = vsyncpa %s13, 0
    %15 = vsyncpa [#allocation4], 0
    %s16 = scalar_lea.sflag [#allocation4], 1
    %17 = vsyncpa %s16, 0
    %18 = vsyncpa [#allocation9], 0
    %s19 = scalar_lea.sflag [#allocation9], 1
    %20 = vsyncpa %s19, 0
    loop: start=0, step=1, limit=4
    $region2: #{tpu_custom_call.1} parent=1 // loop_pre_header
      _
    $region3: #{tpu_custom_call.1} parent=1 // loop_header
      %s22 = sphi 0, %s26
      %p23 = scmp.ge.s32.totalorder %s22, 4
      %s29 = sphi 0, %s41
      %s30 = sphi 0, %s37
      %s31 = sphi 0, %s29
      %s32 = sphi 0, %s30
      %s33 = sphi 0, %s31
      %s34 = sphi 0, %s32
      %s50 = sphi 0, %s52
      %s53 = sphi 0, %s50
      %s54 = sphi 0, %s53
      %s70 = sphi 0, %s54
      %s82 = sphi 0, %s84
      %s85 = sphi 0, %s82
      %s86 = sphi 0, %s85
      %s102 = sphi 0, %s86
      %s108 = sphi 0, %s110
      %s111 = sphi 0, %s108
      %s112 = sphi 0, %s111
      %s128 = sphi 0, %s112
      %s134 = sphi 0, %s136
      %s137 = sphi 0, %s134
      %s138 = sphi 0, %s137
      %s154 = sphi 0, %s138
    $region4: #{tpu_custom_call.1} parent=1 // loop_header_branch
      %25 = sbr.rel (%p23) target = $region8
    $region5: #{tpu_custom_call.1} parent=1 // loop_body
      %s27 = ssub.s32 %s22, 1
      %s28 = ssub.s32 %s22, 2
      %s35 = sadd.s32 1, %s30
      %p36 = scmp.ge.s32.totalorder %s35, 1
      %s37 = scalar_select %p36, 0, %s35
      %s38 = sadd.s32 1, %s29
      %s39 = scalar_select %p36, %s38, %s29
      %p40 = scmp.ge.s32.totalorder %s39, 2
      %s41 = scalar_select %p40, 0, %s39
      %s42 = sadd.s32 %s29, %s30
      %p43 = scmp.lt.s32.totalorder %s42, 0
      %s44 = scalar_select %p43, %s42, 0
      %s45 = sadd.s32 %s41, %s37
      %p46 = scmp.lt.s32.totalorder %s45, 0
      %s47 = scalar_select %p46, %s45, 0
      %s48 = ssub.s32 %s44, %s47
      %p49 = scmp.eq.s32.totalorder %s48, 0
      %s51 = sadd.s32 %s50, 1
      %s52 = scalar_select %p49, %s50, %s51
      %p55 = pneg %p49
      %p56 = scmp.eq.s32.totalorder %s22, 1
      %p57 = por %p55, %p56
      %p58 = scmp.ne.s32.totalorder %s50, %s53
      %p59 = scmp.eq.s32.totalorder %s22, 0
      %p60 = por %p58, %p59
      %p61 = scmp.ne.s32.totalorder %s50, %s53
      %p62 = scmp.eq.s32.totalorder %s27, 1
      %p63 = por %p61, %p62
      %p64 = scmp.ne.s32.totalorder %s53, %s54
      %p65 = scmp.eq.s32.totalorder %s27, 0
      %p66 = por %p64, %p65
      %p67 = scmp.ne.s32.totalorder %s53, %s54
      %p68 = scmp.eq.s32.totalorder %s28, 1
      %p69 = por %p67, %p68
      %p71 = scmp.ne.s32.totalorder %s54, %s70
      %p72 = scmp.eq.s32.totalorder %s28, 0
      %p73 = por %p71, %p72
      %s74 = sadd.s32 %s29, %s30
      %p75 = scmp.lt.s32.totalorder %s74, 0
      %s76 = scalar_select %p75, %s74, 0
      %s77 = sadd.s32 %s41, %s37
      %p78 = scmp.lt.s32.totalorder %s77, 0
      %s79 = scalar_select %p78, %s77, 0
      %s80 = ssub.s32 %s76, %s79
      %p81 = scmp.eq.s32.totalorder %s80, 0
      %s83 = sadd.s32 %s82, 1
      %s84 = scalar_select %p81, %s82, %s83
      %p87 = pneg %p81
      %p88 = scmp.eq.s32.totalorder %s22, 1
      %p89 = por %p87, %p88
      %p90 = scmp.ne.s32.totalorder %s82, %s85
      %p91 = scmp.eq.s32.totalorder %s22, 0
      %p92 = por %p90, %p91
      %p93 = scmp.ne.s32.totalorder %s82, %s85
      %p94 = scmp.eq.s32.totalorder %s27, 1
      %p95 = por %p93, %p94
      %p96 = scmp.ne.s32.totalorder %s85, %s86
      %p97 = scmp.eq.s32.totalorder %s27, 0
      %p98 = por %p96, %p97
      %p99 = scmp.ne.s32.totalorder %s85, %s86
      %p100 = scmp.eq.s32.totalorder %s28, 1
      %p101 = por %p99, %p100
      %p103 = scmp.ne.s32.totalorder %s86, %s102
      %p104 = scmp.eq.s32.totalorder %s28, 0
      %p105 = por %p103, %p104
      %s106 = ssub.s32 %s29, %s41
      %p107 = scmp.eq.s32.totalorder %s106, 0
      %s109 = sadd.s32 %s108, 1
      %s110 = scalar_select %p107, %s108, %s109
      %p113 = pneg %p107
      %p114 = scmp.eq.s32.totalorder %s22, 1
      %p115 = por %p113, %p114
      %p116 = scmp.ne.s32.totalorder %s108, %s111
      %p117 = scmp.eq.s32.totalorder %s22, 0
      %p118 = por %p116, %p117
      %p119 = scmp.ne.s32.totalorder %s108, %s111
      %p120 = scmp.eq.s32.totalorder %s27, 1
      %p121 = por %p119, %p120
      %p122 = scmp.ne.s32.totalorder %s111, %s112
      %p123 = scmp.eq.s32.totalorder %s27, 0
      %p124 = por %p122, %p123
      %p125 = scmp.ne.s32.totalorder %s111, %s112
      %p126 = scmp.eq.s32.totalorder %s28, 1
      %p127 = por %p125, %p126
      %p129 = scmp.ne.s32.totalorder %s112, %s128
      %p130 = scmp.eq.s32.totalorder %s28, 0
      %p131 = por %p129, %p130
      %s132 = ssub.s32 %s29, %s41
      %p133 = scmp.eq.s32.totalorder %s132, 0
      %s135 = sadd.s32 %s134, 1
      %s136 = scalar_select %p133, %s134, %s135
      %p139 = pneg %p133
      %p140 = scmp.eq.s32.totalorder %s22, 1
      %p141 = por %p139, %p140
      %p142 = scmp.ne.s32.totalorder %s134, %s137
      %p143 = scmp.eq.s32.totalorder %s22, 0
      %p144 = por %p142, %p143
      %p145 = scmp.ne.s32.totalorder %s134, %s137
      %p146 = scmp.eq.s32.totalorder %s27, 1
      %p147 = por %p145, %p146
      %p148 = scmp.ne.s32.totalorder %s137, %s138
      %p149 = scmp.eq.s32.totalorder %s27, 0
      %p150 = por %p148, %p149
      %p151 = scmp.ne.s32.totalorder %s137, %s138
      %p152 = scmp.eq.s32.totalorder %s28, 1
      %p153 = por %p151, %p152
      %p155 = scmp.ne.s32.totalorder %s138, %s154
      %p156 = scmp.eq.s32.totalorder %s28, 0
      %p157 = por %p155, %p156
      %p158 = scmp.le.s32.totalorder 1, %s22
      %p159 = scmp.lt.s32.totalorder %s22, 3
      %p160 = pnand %p158, %p159
      %p161 = pneg %p160
      // Predicated region
      $region9: #{tpu_custom_call.1} parent=5 // pred_check
        _
      $region10: #{tpu_custom_call.1} parent=5 // pred_check_branch
        %163 = sbr.rel (%p160) target = $region12
      $region11: #{tpu_custom_call.1} parent=5 // pred_region
        %s164 = ssub.s32 %s22, 1
      $region12: #{tpu_custom_call.1} parent=5 // pred_fallthru
        _
      %p165 = scmp.lt.s32.totalorder %s22, 2
      // Predicated region
      $region13: #{tpu_custom_call.1} parent=5 // pred_check
        %p166 = pneg %p165
      $region14: #{tpu_custom_call.1} parent=5 // pred_check_branch
        %168 = sbr.rel (%p166) target = $region16
      $region15: #{tpu_custom_call.1} parent=5 // pred_region
        // Predicated region
        $region17: #{tpu_custom_call.1} parent=15 // pred_check
          %p169 = pneg %p60
        $region18: #{tpu_custom_call.1} parent=15 // pred_check_branch
          %171 = sbr.rel (%p169) target = $region20
        $region19: #{tpu_custom_call.1} parent=15 // pred_region
          %s172 = sand.u32 %s50, 1
          %s173 = scalar_lea.sflag [#allocation3], %s172
          %s174 = sand.u32 %s50, 1
          %s175 = smul.addr %s174, 16
          %s176 = scalar_lea.vmem [#allocation2], %s175
          %s177 = sadd.s32 %s29, %s30
          %p178 = scmp.lt.s32.totalorder %s177, 0
          %s179 = scalar_select %p178, %s177, 0
          %s180 = smul.u32 2, %s179
          %s182 = ssub.s32 256, 256
          %183 = vsyncadd %s173, %s182
          %s184 = smul.addr %s180, 128
          %s185 = scalar_lea.hbm %s0, %s184
          %s186 = sshll.u32 %s176, 4
          %s187 = int_to_ptr.vmem [resolvable:$true] %s186
          %192 = dma.hbm_to_vmem [thread:$0]  %s185, 256, %s187, %s173, 128, 128, 8
        $region20: #{tpu_custom_call.1} parent=15 // pred_fallthru
          _
        // Predicated region
        $region21: #{tpu_custom_call.1} parent=15 // pred_check
          %p193 = pneg %p92
        $region22: #{tpu_custom_call.1} parent=15 // pred_check_branch
          %195 = sbr.rel (%p193) target = $region24
        $region23: #{tpu_custom_call.1} parent=15 // pred_region
          %s196 = sand.u32 %s82, 1
          %s197 = scalar_lea.sflag [#allocation6], %s196
          %s198 = sand.u32 %s82, 1
          %s199 = smul.addr %s198, 16
          %s200 = scalar_lea.vmem [#allocation5], %s199
          %s201 = sadd.s32 %s29, %s30
          %p202 = scmp.lt.s32.totalorder %s201, 0
          %s203 = scalar_select %p202, %s201, 0
          %s204 = smul.u32 2, %s203
          %s206 = ssub.s32 256, 256
          %207 = vsyncadd %s197, %s206
          %s208 = smul.addr %s204, 128
          %s209 = scalar_lea.hbm %s1, %s208
          %s210 = sshll.u32 %s200, 4
          %s211 = int_to_ptr.vmem [resolvable:$true] %s210
          %216 = dma.hbm_to_vmem [thread:$0]  %s209, 256, %s211, %s197, 128, 128, 8
        $region24: #{tpu_custom_call.1} parent=15 // pred_fallthru
          _
      $region16: #{tpu_custom_call.1} parent=5 // pred_fallthru
        _
      %p217 = scmp.le.s32.totalorder 1, %s22
      %p218 = scmp.lt.s32.totalorder %s22, 3
      %p219 = pnand %p217, %p218
      %p220 = pneg %p219
      // Predicated region
      $region25: #{tpu_custom_call.1} parent=5 // pred_check
        _
      $region26: #{tpu_custom_call.1} parent=5 // pred_check_branch
        %222 = sbr.rel (%p219) target = $region28
      $region27: #{tpu_custom_call.1} parent=5 // pred_region
        %s223 = ssub.s32 %s22, 1
        %s224 = sand.u32 %s53, 1
        %s225 = scalar_lea.sflag [#allocation3], %s224
        %s226 = sand.u32 %s53, 1
        %s227 = smul.addr %s226, 16
        %s228 = scalar_lea.vmem [#allocation2], %s227
        // Predicated region
        $region29: #{tpu_custom_call.1} parent=27 // pred_check
          %p229 = pneg %p66
        $region30: #{tpu_custom_call.1} parent=27 // pred_check_branch
          %231 = sbr.rel (%p229) target = $region32
        $region31: #{tpu_custom_call.1} parent=27 // pred_region
          %232 = dma.done %s225, 256
        $region32: #{tpu_custom_call.1} parent=27 // pred_fallthru
          _
        %s233 = sand.u32 %s85, 1
        %s234 = scalar_lea.sflag [#allocation6], %s233
        %s235 = sand.u32 %s85, 1
        %s236 = smul.addr %s235, 16
        %s237 = scalar_lea.vmem [#allocation5], %s236
        // Predicated region
        $region33: #{tpu_custom_call.1} parent=27 // pred_check
          %p238 = pneg %p98
        $region34: #{tpu_custom_call.1} parent=27 // pred_check_branch
          %240 = sbr.rel (%p238) target = $region36
        $region35: #{tpu_custom_call.1} parent=27 // pred_region
          %241 = dma.done %s234, 256
        $region36: #{tpu_custom_call.1} parent=27 // pred_fallthru
          _
        %s242 = sand.u32 %s53, 1
        %s243 = scalar_lea.sflag [#allocation3], %s242
        %s244 = sand.u32 %s53, 1
        %s245 = smul.addr %s244, 16
        %s246 = scalar_lea.vmem [#allocation2], %s245
        %p247 = pneg %p66
        %p248 = pneg %p63
        %s249 = sand.u32 %s85, 1
        %s250 = scalar_lea.sflag [#allocation6], %s249
        %s251 = sand.u32 %s85, 1
        %s252 = smul.addr %s251, 16
        %s253 = scalar_lea.vmem [#allocation5], %s252
        %p254 = pneg %p98
        %p255 = pneg %p95
        %p256 = pneg %p124
        %p257 = pneg %p121
        %s258 = sand.u32 %s111, 1
        %s259 = scalar_lea.sflag [#allocation4], %s258
        %s260 = sand.u32 %s111, 1
        %s261 = smul.addr %s260, 8
        %s262 = scalar_lea.vmem [#allocation7], %s261
        %p263 = pneg %p150
        %p264 = pneg %p147
        %s265 = sand.u32 %s137, 1
        %s266 = scalar_lea.sflag [#allocation9], %s265
        %s267 = sand.u32 %s137, 1
        %s268 = smul.addr %s267, 8
        %s269 = scalar_lea.vmem [#allocation8], %s268
        %s270 = sadd.s32 %s31, %s32
        %p271 = scmp.lt.s32.totalorder %s270, 0
        %s272 = scalar_select %p271, %s270, 0
        %s273 = smul.u32 2, %s272
        %s274 = sadd.s32 %s31, %s32
        %p275 = scmp.lt.s32.totalorder %s274, 0
        %s276 = scalar_select %p275, %s274, 0
        %s277 = smul.u32 2, %s276
        %p278 = scmp.eq.s32.totalorder %s32, 0
        // Predicated region
        $region37: #{tpu_custom_call.1} parent=27 // pred_check
          %p279 = pneg %p278
        $region38: #{tpu_custom_call.1} parent=27 // pred_check_branch
          %281 = sbr.rel (%p279) target = $region40
        $region39: #{tpu_custom_call.1} parent=27 // pred_region
          %282 = vst [vmem:[%s262] sm:$0xff] 0.0
          %283 = vst [vmem:[%s269] sm:$0xff] 0.0
        $region40: #{tpu_custom_call.1} parent=27 // pred_fallthru
          _
        %v284 = vld [vmem:[%s237] sm:$0xff]
        %v285 = vld [vmem:[%s237 + $0x8] sm:$0xff]
        %v286 = vld [vmem:[%s228] sm:$0xff]
        %v287 = vld [vmem:[%s228 + $0x8] sm:$0xff]
        %vm288 = vcmp.gt.f32.partialorder %v284, 0.05
        %vm289 = vcmp.gt.f32.partialorder %v285, 0.05
        %v290 = vsel %vm288, 0.5272727, 0.16363639
        %v291 = vsel %vm289, 0.5272727, 0.16363639
        %vm292 = vcmp.gt.f32.partialorder %v284, 0.15
        %vm293 = vcmp.gt.f32.partialorder %v285, 0.15
        %v294 = vsel %vm292, 0.6909091, %v290
        %v295 = vsel %vm293, 0.6909091, %v291
        %vm296 = vcmp.gt.f32.partialorder %v284, 0.35000002
        %vm297 = vcmp.gt.f32.partialorder %v285, 0.35000002
        %v298 = vsel %vm296, 0.39999998, %v294
        %v299 = vsel %vm297, 0.39999998, %v295
        %vm300 = vcmp.gt.f32.partialorder %v284, 0.45
        %vm301 = vcmp.gt.f32.partialorder %v285, 0.45
        %v302 = vsel %vm300, 0.1, %v298
        %v303 = vsel %vm301, 0.1, %v299
        %vm304 = vcmp.gt.f32.partialorder %v284, 0.55
        %vm305 = vcmp.gt.f32.partialorder %v285, 0.55
        %v306 = vsel %vm304, 1.0, %v302
        %v307 = vsel %vm305, 1.0, %v303
        %vm308 = vcmp.gt.f32.partialorder %v284, 0.65
        %vm309 = vcmp.gt.f32.partialorder %v285, 0.65
        %v310 = vsel %vm308, 0.8181818, %v306
        %v311 = vsel %vm309, 0.8181818, %v307
        %vm312 = vcmp.gt.f32.partialorder %v284, 0.75
        %vm313 = vcmp.gt.f32.partialorder %v285, 0.75
        %v314 = vsel %vm312, 0.5090909, %v310
        %v315 = vsel %vm313, 0.5090909, %v311
        %vm316 = vcmp.gt.f32.partialorder %v284, 0.85
        %vm317 = vcmp.gt.f32.partialorder %v285, 0.85
        %v318 = vsel %vm316, 0.18181819, %v314
        %v319 = vsel %vm317, 0.18181819, %v315
        %v320 = vsub.f32 %v284, %v286
        %v321 = vsub.f32 %v285, %v287
        %v322 = vmul.f32 %v320, %v320
        %v323 = vmul.f32 %v321, %v321
        %v324 = vmul.f32 %v318, %v322
        %v325 = vmul.f32 %v319, %v323
        %s326 = sadd.s32 %s31, %s32
        %s327 = sadd.s32 %s326, 1
        %s328 = smul.u32 %s327, 16
        %p329 = scmp.gt.s32.totalorder %s328, 16
        %p330 = scmp.le.s32.totalorder %s328, 16
        // Predicated region
        $region41: #{tpu_custom_call.1} parent=27 // pred_check
          %p331 = pneg %p330
        $region42: #{tpu_custom_call.1} parent=27 // pred_check_branch
          %333 = sbr.rel (%p331) target = $region44
        $region43: #{tpu_custom_call.1} parent=27 // pred_region
          %v334 = vld [vmem:[%s262] sm:$0xff]
          %v335 = vadd.f32 %v318, %v319
          %v336 = vadd.f32 %v334, %v335
          %337 = vst [vmem:[%s262] sm:$0xff] %v336
          %v338 = vld [vmem:[%s269] sm:$0xff]
          %v339 = vadd.f32 %v324, %v325
          %v340 = vadd.f32 %v338, %v339
          %341 = vst [vmem:[%s269] sm:$0xff] %v340
        $region44: #{tpu_custom_call.1} parent=27 // pred_fallthru
          _
        // Predicated region
        $region45: #{tpu_custom_call.1} parent=27 // pred_check
          %p342 = pneg %p329
        $region46: #{tpu_custom_call.1} parent=27 // pred_check_branch
          %344 = sbr.rel (%p342) target = $region48
        $region47: #{tpu_custom_call.1} parent=27 // pred_region
          %v345 = vlaneseq
          %v346 = vshrl.u32 %v345, 7
          %v347 = vadd.s32 %v346, 8
          %s348 = smul.u32 %s326, 16
          %v349 = vstv %s348
          %v350 = vadd.s32 %v346, %v349
          %v351 = vadd.s32 %v347, %v349
          %vm352 = vcmp.lt.s32.totalorder %v350, 16
          %vm353 = vcmp.lt.s32.totalorder %v351, 16
          %v354 = vsel %vm352, %v318, 0.0
          %v355 = vsel %vm353, %v319, 0.0
          %v356 = vsel %vm352, %v324, 0.0
          %v357 = vsel %vm353, %v325, 0.0
          %v358 = vld [vmem:[%s262] sm:$0xff]
          %v359 = vadd.f32 %v354, %v355
          %v360 = vadd.f32 %v358, %v359
          %361 = vst [vmem:[%s262] sm:$0xff] %v360
          %v362 = vld [vmem:[%s269] sm:$0xff]
          %v363 = vadd.f32 %v356, %v357
          %v364 = vadd.f32 %v362, %v363
          %365 = vst [vmem:[%s269] sm:$0xff] %v364
        $region48: #{tpu_custom_call.1} parent=27 // pred_fallthru
          _
        %s366 = sand.u32 %s111, 1
        %s367 = scalar_lea.sflag [#allocation4], %s366
        %s368 = sand.u32 %s111, 1
        %s369 = smul.addr %s368, 8
        %s370 = scalar_lea.vmem [#allocation7], %s369
        %s371 = sand.u32 %s137, 1
        %s372 = scalar_lea.sflag [#allocation9], %s371
        %s373 = sand.u32 %s137, 1
        %s374 = smul.addr %s373, 8
        %s375 = scalar_lea.vmem [#allocation8], %s374
        // Predicated region
        $region49: #{tpu_custom_call.1} parent=27 // pred_check
          %p376 = pneg %p121
        $region50: #{tpu_custom_call.1} parent=27 // pred_check_branch
          %378 = sbr.rel (%p376) target = $region52
        $region51: #{tpu_custom_call.1} parent=27 // pred_region
          %s380 = ssub.s32 128, 128
          %381 = vsyncadd %s367, %s380
          %s382 = smul.addr %s31, 128
          %s383 = scalar_lea.hbm %s2, %s382
          %s385 = sshll.u32 %s370, 4
          %s386 = int_to_ptr.vmem [resolvable:$true] %s385
          %388 = dma.vmem_to_hbm [thread:$0]  %s386, 128, %s383, %s367
        $region52: #{tpu_custom_call.1} parent=27 // pred_fallthru
          _
        // Predicated region
        $region53: #{tpu_custom_call.1} parent=27 // pred_check
          %p389 = pneg %p147
        $region54: #{tpu_custom_call.1} parent=27 // pred_check_branch
          %391 = sbr.rel (%p389) target = $region56
        $region55: #{tpu_custom_call.1} parent=27 // pred_region
          %s393 = ssub.s32 128, 128
          %394 = vsyncadd %s372, %s393
          %s395 = smul.addr %s31, 128
          %s396 = scalar_lea.hbm %s3, %s395
          %s398 = sshll.u32 %s375, 4
          %s399 = int_to_ptr.vmem [resolvable:$true] %s398
          %401 = dma.vmem_to_hbm [thread:$0]  %s399, 128, %s396, %s372
        $region56: #{tpu_custom_call.1} parent=27 // pred_fallthru
          _
      $region28: #{tpu_custom_call.1} parent=5 // pred_fallthru
        _
      %p402 = scmp.le.s32.totalorder 2, %s22
      // Predicated region
      $region57: #{tpu_custom_call.1} parent=5 // pred_check
        %p403 = pneg %p402
      $region58: #{tpu_custom_call.1} parent=5 // pred_check_branch
        %405 = sbr.rel (%p403) target = $region60
      $region59: #{tpu_custom_call.1} parent=5 // pred_region
        %s406 = ssub.s32 %s22, 2
        // Predicated region
        $region61: #{tpu_custom_call.1} parent=59 // pred_check
          %p407 = pneg %p127
        $region62: #{tpu_custom_call.1} parent=59 // pred_check_branch
          %409 = sbr.rel (%p407) target = $region64
        $region63: #{tpu_custom_call.1} parent=59 // pred_region
          %s410 = sand.u32 %s112, 1
          %s411 = scalar_lea.sflag [#allocation4], %s410
          %s412 = sand.u32 %s112, 1
          %s413 = smul.addr %s412, 8
          %s414 = scalar_lea.vmem [#allocation7], %s413
          %415 = dma.done %s411, 128
        $region64: #{tpu_custom_call.1} parent=59 // pred_fallthru
          _
        // Predicated region
        $region65: #{tpu_custom_call.1} parent=59 // pred_check
          %p416 = pneg %p153
        $region66: #{tpu_custom_call.1} parent=59 // pred_check_branch
          %418 = sbr.rel (%p416) target = $region68
        $region67: #{tpu_custom_call.1} parent=59 // pred_region
          %s419 = sand.u32 %s138, 1
          %s420 = scalar_lea.sflag [#allocation9], %s419
          %s421 = sand.u32 %s138, 1
          %s422 = smul.addr %s421, 8
          %s423 = scalar_lea.vmem [#allocation8], %s422
          %424 = dma.done %s420, 128
        $region68: #{tpu_custom_call.1} parent=59 // pred_fallthru
          _
      $region60: #{tpu_custom_call.1} parent=5 // pred_fallthru
        _
    $region6: #{tpu_custom_call.1} parent=1 // loop_footer
      %s26 = sadd.s32 1, %s22
    $region7: #{tpu_custom_call.1} parent=1 // loop_footer_branch
      %21 = sbr.rel target = $region3
    $region8: #{tpu_custom_call.1} parent=1 // loop_exit
      _
    %425 = vsyncpa [#allocation3], 1
    %s426 = scalar_lea.sflag [#allocation3], 1
    %427 = vsyncpa %s426, 1
    %428 = vsyncpa [#allocation6], 1
    %s429 = scalar_lea.sflag [#allocation6], 1
    %430 = vsyncpa %s429, 1
    %431 = vsyncpa [#allocation4], 1
    %s432 = scalar_lea.sflag [#allocation4], 1
    %433 = vsyncpa %s432, 1
    %434 = vsyncpa [#allocation9], 1
    %s435 = scalar_lea.sflag [#allocation9], 1
    %436 = vsyncpa %s435, 1

</llo_original>
